<compile_context>
chip_gen: v7x
topology: tpu7x:2x2x1
jax: 0.10.0
libtpu: 0.0.40
codegen_flags: <defaults>
</compile_context>

<pallas_src>
import jax
import jax.numpy as jnp
from jax.experimental import pallas as pl
from jax.experimental.pallas import tpu as pltpu


# ---------------------------------------------------------------------------
# Per-chip VMEM sizing (review: don't hard-code an 8 MiB budget).
# ---------------------------------------------------------------------------
def _vmem_limit_bytes():
    """Scoped-VMEM limit to request from Mosaic, derived from the chip.

    v5e/v6e have 128 MiB physical VMEM (default scoped limit 16/32 MiB — too
    small for large streaming tiles); v7x has 64 MiB per TensorCore.  Request
    ~80% of physical, capped at 100 MiB, leaving headroom for compiler scratch.
    """
    phys = None
    try:
        phys = getattr(pltpu.get_tpu_info(), "vmem_capacity_bytes", None)
    except Exception:
        phys = None
    if not phys:
        phys = 64 << 20  # conservative fallback: v7x per-TensorCore VMEM
    return int(min(phys * 4 // 5, 100 << 20))


def _pick_batch_tile(B, N, C, itemsize, vmem_limit_bytes):
    """Batch tile for the similarity kernel.

    One x_embed block is double-buffered by BlockSpec pipelining; the resident
    p_norm block, the double-buffered (tb,C)/(tb,P) f32 outputs and compiler
    scratch share the rest of the scoped limit, so budget roughly half of it
    (capped at 24 MiB — beyond that the ~0.35us per-grid-step overhead is
    already <1% of the tile's DMA time) for a single x_embed buffer.
    Tiles < B are multiples of 8 so the 2-D output blocks satisfy (8,128).
    """
    budget = min(24 << 20, max(4 << 20, vmem_limit_bytes // 2 - (4 << 20)))
    per_row = max(N * C * itemsize, 1)
    cap = max(int(budget // per_row), 1)

    if B <= 8 or cap >= B:
        tb = B
    else:
        tb = max(8, (cap // 8) * 8)

    # v7x megacore: if the whole batch collapsed into a single grid step, split
    # it in two so the "parallel" batch axis can shard across both TensorCores.
    # On single-core chips this only adds one ~0.35us grid step.
    if tb == B and B >= 16:
        tb = ((B + 1) // 2 + 7) // 8 * 8
    return min(tb, B)


# ---------------------------------------------------------------------------
# Kernel 1: token mean + query L2-norm + similarity (batch-tiled, pipelined).
# ---------------------------------------------------------------------------
def _key_sim_kernel(x_embed_ref, p_norm_ref, x_norm_ref, sim_ref):
    eps = jnp.float32(1e-12)

    x = x_embed_ref[...].astype(jnp.float32)                   # (tb, N, C)
    x_mean = jnp.mean(x, axis=1)                               # (tb, C)  'mean' key

    sq = jnp.sum(x_mean * x_mean, axis=1, keepdims=True)
    x_norm = x_mean * jax.lax.rsqrt(jnp.maximum(sq, eps))      # (tb, C)
    x_norm_ref[...] = x_norm

    p_norm = p_norm_ref[...]                                   # (P, C), resident, f32
    # Contract C directly (no explicit transpose before the MXU).
    sim_ref[...] = jax.lax.dot_general(
        x_norm, p_norm,
        dimension_numbers=(((1,), (1,)), ((), ())),
        preferred_element_type=jnp.float32,
    )                                                          # (tb, P)


# ---------------------------------------------------------------------------
# Kernel 2: fused prompt gather + concat -> prompted_embedding (B, K*L+N, C).
# ---------------------------------------------------------------------------
def _make_assemble_kernel(K, L, N, tb):
    KL = K * L

    def kernel(idx_ref, x_ref, prompt_hbm, out_ref, pbuf, sems):
        # idx_ref: flat (B_pad*K,) int32 in SMEM (scalar prefetch)
        # x_ref:   (tb, N, C) VMEM block of x_embed
        # prompt_hbm: (P, L, C) raw HBM ref
        # out_ref: (tb, K*L+N, C) VMEM output block
        # pbuf:    (tb, K, L, C) VMEM staging, sems: (tb, K) DMA semaphores
        b0 = pl.program_id(0) * tb

        copies = []
        for j in range(tb):                 # static unroll (tb <= 8)
            for k in range(K):              # static unroll (K small)
                cp = pltpu.make_async_copy(
                    prompt_hbm.at[idx_ref[(b0 + j) * K + k]],   # (L, C) HBM row
                    pbuf.at[j, k],
                    sems.at[j, k],
                )
                cp.start()
                copies.append((j, k, cp))

        # Copy the x_embed tile into the tail of the output block while the
        # prompt-row DMAs are in flight: one read of x_embed, one write into
        # prompted_embedding — no separate concatenate pass through HBM.
        out_ref[:, KL:, :] = x_ref[...].astype(out_ref.dtype)

        for j, k, cp in copies:
            cp.wait()
            out_ref[j, k * L:(k + 1) * L, :] = pbuf[j, k].astype(out_ref.dtype)

    return kernel


def _assemble_prompted_embedding(x_embed, prompt, idx, vmem_limit_bytes):
    B, N, C = x_embed.shape
    _, L, _ = prompt.shape
    K = idx.shape[1]
    T = K * L + N
    out_dtype = jnp.result_type(prompt.dtype, x_embed.dtype)

    # Small batch tile: per step it streams tb*(N + K*L)*C elements, well above
    # the ~0.35us grid-step overhead for realistic shapes, while keeping the
    # statically-unrolled DMA count (tb*K) modest.
    tb = B if B <= 8 else 8
    num_tiles = pl.cdiv(B, tb)
    b_pad = num_tiles * tb

    idx_flat = idx.astype(jnp.int32).reshape(-1)
    if b_pad > B:
        # Pad with prompt index 0 (always valid) so the tail tile's DMAs stay
        # in bounds; the padded output rows are clipped by the out BlockSpec.
        idx_flat = jnp.concatenate(
            [idx_flat, jnp.zeros(((b_pad - B) * K,), jnp.int32)])

    kernel = _make_assemble_kernel(K, L, N, tb)

    return pl.pallas_call(
        kernel,
        out_shape=jax.ShapeDtypeStruct((B, T, C), out_dtype),
        grid_spec=pltpu.PrefetchScalarGridSpec(
            num_scalar_prefetch=1,
            grid=(num_tiles,),
            in_specs=[
                pl.BlockSpec((tb, N, C), lambda i, idx_ref: (i, 0, 0)),
                pl.BlockSpec(memory_space=pl.ANY),       # prompt stays in HBM
            ],
            out_specs=pl.BlockSpec((tb, T, C), lambda i, idx_ref: (i, 0, 0)),
            scratch_shapes=[
                pltpu.VMEM((tb, K, L, C), prompt.dtype),
                pltpu.SemaphoreType.DMA((tb, K)),
            ],
        ),
        compiler_params=pltpu.CompilerParams(
            dimension_semantics=("parallel",),
            vmem_limit_bytes=vmem_limit_bytes,
        ),
    )(idx_flat, x_embed, prompt)


# ---------------------------------------------------------------------------
# Forward pass.
# ---------------------------------------------------------------------------
def buffer_prompt_forward(x_embed, prompt_key, prompt, top_k):
    """Equivalent to BufferPrompt(embedding_key='mean', batchwise_prompt=False)
    forward with prompt_mask=None.  x_embed streams at its native dtype."""
    B, N, C = x_embed.shape
    P, _ = prompt_key.shape
    _, L, _ = prompt.shape

    vmem_limit = _vmem_limit_bytes()

    # Prompt-key L2 normalization in plain JAX: P x C is a few KiB, so a
    # dedicated pallas_call (old version) cost more in launch + HBM round-trip
    # than the op itself.
    pk = prompt_key.astype(jnp.float32)
    p_norm = pk * jax.lax.rsqrt(
        jnp.maximum(jnp.sum(pk * pk, axis=1, keepdims=True), jnp.float32(1e-12)))

    # --- batch-tiled similarity kernel (pipelined x_embed DMA) ---------------
    itemsize = jnp.dtype(x_embed.dtype).itemsize
    tb = _pick_batch_tile(B, N, C, itemsize, vmem_limit)
    num_tiles = pl.cdiv(B, tb)

    # NOTE: the (tb, C)/(tb, P) stores are masked (lane-sparse) when C or P is
    # < 128, but output bytes are ~(C+P)/(N*C) of the streamed input bytes —
    # negligible for realistic token counts, so we skip packing them into one
    # 128-lane-padded slab.  Tail tiles (B % tb != 0) compute on padded rows;
    # results are row-local and clipped on writeback — do not add cross-row
    # reductions inside this kernel.
    x_norm, similarity = pl.pallas_call(
        _key_sim_kernel,
        grid=(num_tiles,),
        in_specs=[
            pl.BlockSpec((tb, N, C), lambda i: (i, 0, 0)),     # x_embed tile
            pl.BlockSpec((P, C), lambda i: (0, 0)),            # resident p_norm
        ],
        out_specs=(
            pl.BlockSpec((tb, C), lambda i: (i, 0)),
            pl.BlockSpec((tb, P), lambda i: (i, 0)),
        ),
        out_shape=(
            jax.ShapeDtypeStruct((B, C), jnp.float32),
            jax.ShapeDtypeStruct((B, P), jnp.float32),
        ),
        compiler_params=pltpu.CompilerParams(
            dimension_semantics=("parallel",),                 # megacore on v7x
            vmem_limit_bytes=vmem_limit,
        ),
    )(x_embed, p_norm)

    # --- selection (plain JAX) ------------------------------------------------
    # TODO(synk): batchwise_prompt=True (torch.unique + count-based top-k) and
    # the prompt_mask branch are not implemented; module defaults cover this path.
    sim_vals, idx = jax.lax.top_k(similarity, top_k)           # (B, K) each

    # reduce_sim = sum(selected_key * x_embed_norm)/B == sum(top_k sims)/B.
    reduce_sim = jnp.sum(sim_vals) / jnp.float32(B)
    batched_key_norm = jnp.take(p_norm, idx, axis=0)           # (B, K, C) — tiny

    # --- fused gather + concat -> prompted_embedding --------------------------
    prompted_embedding = _assemble_prompted_embedding(
        x_embed, prompt, idx, vmem_limit)

    return {
        "prompt_idx": idx,
        "prompt_norm": p_norm,
        "x_embed_norm": x_norm,
        "similarity": similarity,
        "selected_key": batched_key_norm,
        "reduce_sim": reduce_sim,
        "total_prompt_len": top_k * L,
        "prompted_embedding": prompted_embedding,
    }


# ---------------------------------------------------------------------------
# Pure-JAX reference for correctness checks.
# ---------------------------------------------------------------------------
def _reference_forward(x_embed, prompt_key, prompt, top_k):
    eps = 1e-12
    x_mean = jnp.mean(x_embed.astype(jnp.float32), axis=1)
    x_norm = x_mean * jax.lax.rsqrt(
        jnp.maximum(jnp.sum(x_mean * x_mean, axis=1, keepdims=True), eps))
    pk = prompt_key.astype(jnp.float32)
    p_norm = pk * jax.lax.rsqrt(
        jnp.maximum(jnp.sum(pk * pk, axis=1, keepdims=True), eps))
    sim = x_norm @ p_norm.T
    _, idx = jax.lax.top_k(sim, top_k)
    sel = jnp.take(p_norm, idx, axis=0)
    reduce_sim = jnp.sum(sel * x_norm[:, None, :]) / x_embed.shape[0]
    return sim, reduce_sim, x_norm, p_norm


if __name__ == "__main__":
    # Small deterministic config consistent with the module.
    B, N, C = 2, 8, 32          # batch, tokens, embed_dim
    P, L, K = 10, 5, 3          # pool_size, prompt length, top_k

    key = jax.random.PRNGKey(0)
    k1, k2, k3 = jax.random.split(key, 3)
    x_embed = jax.random.normal(k1, (B, N, C), dtype=jnp.float32)
    prompt_key = jax.random.uniform(k2, (P, C), dtype=jnp.float32)   # 'uniform'
    prompt = jax.random.uniform(k3, (P, L, C), dtype=jnp.float32)    # 'uniform'

    out = buffer_prompt_forward(x_embed, prompt_key, prompt, K)

    jax.block_until_ready(out["prompted_embedding"])
    jax.block_until_ready(out["similarity"])
    jax.block_until_ready(out["reduce_sim"])

    assert out["prompted_embedding"].shape == (B, K * L + N, C)
    assert out["prompt_idx"].shape == (B, K)
    assert out["selected_key"].shape == (B, K, C)
    assert out["total_prompt_len"] == K * L

    # Numerical checks against the pure-JAX reference.
    ref_sim, ref_reduce, ref_xnorm, ref_pnorm = _reference_forward(
        x_embed, prompt_key, prompt, K)
    assert jnp.allclose(out["similarity"], ref_sim, rtol=1e-3, atol=1e-3)
    assert jnp.allclose(out["reduce_sim"], ref_reduce, rtol=1e-3, atol=1e-3)
    assert jnp.allclose(out["x_embed_norm"], ref_xnorm, rtol=1e-3, atol=1e-3)
    assert jnp.allclose(out["prompt_norm"], ref_pnorm, rtol=1e-6, atol=1e-6)

    # The fused assemble kernel must reproduce gather + concat exactly
    # (pure data movement) for the indices it was given.
    ref_pe = jnp.concatenate(
        [jnp.take(prompt, out["prompt_idx"], axis=0).reshape(B, K * L, C),
         x_embed], axis=1)
    assert jnp.array_equal(out["prompted_embedding"], ref_pe)

    print("KERNEL_OK")
</pallas_src>

<mosaic_0001>
module attributes {stable_mosaic.version = 11 : i64} {
  func.func @_key_sim_kernel(%arg0: i32, %arg1: memref<2x8x32xf32, #tpu.memory_space<vmem>>, %arg2: memref<10x32xf32, #tpu.memory_space<vmem>>, %arg3: memref<2x32xf32, #tpu.memory_space<vmem>>, %arg4: memref<2x10xf32, #tpu.memory_space<vmem>>) attributes {dimension_semantics = [#tpu.dimension_semantics<parallel>], iteration_bounds = array<i64: 1>, scalar_prefetch = 0 : i64, scratch_operands = 0 : i64, tpu.core_type = #tpu.core_type<tc>, window_params = [{transform_indices = @transform_0, window_bounds = array<i64: 2, 8, 32>}, {pipeline_mode = #tpu.pipeline_mode<synchronous>, transform_indices = @transform_1, window_bounds = array<i64: 10, 32>}, {transform_indices = @transform_2, window_bounds = array<i64: 2, 32>}, {transform_indices = @transform_3, window_bounds = array<i64: 2, 10>}]} {
    %c0 = arith.constant 0 : index
    %c0_0 = arith.constant 0 : index
    %c0_1 = arith.constant 0 : index
    %0 = vector.load %arg1[%c0, %c0_0, %c0_1] : memref<2x8x32xf32, #tpu.memory_space<vmem>>, vector<2x8x32xf32>
    %cst = arith.constant dense<0.000000e+00> : vector<2x32xf32>
    %1 = vector.multi_reduction <add>, %0, %cst [1] : vector<2x8x32xf32> to vector<2x32xf32>
    %cst_2 = arith.constant 8.000000e+00 : f32
    %2 = vector.broadcast %cst_2 : f32 to vector<2x32xf32>
    %3 = arith.divf %1, %2 : vector<2x32xf32>
    %4 = arith.mulf %3, %3 : vector<2x32xf32>
    %cst_3 = arith.constant dense<0.000000e+00> : vector<2xf32>
    %5 = vector.multi_reduction <add>, %4, %cst_3 [1] : vector<2x32xf32> to vector<2xf32>
    %6 = vector.shape_cast %5 : vector<2xf32> to vector<2x1xf32>
    %cst_4 = arith.constant 9.99999996E-13 : f32
    %7 = vector.broadcast %cst_4 : f32 to vector<2x1xf32>
    %8 = arith.maximumf %6, %7 : vector<2x1xf32>
    %9 = math.rsqrt %8 : vector<2x1xf32>
    %10 = vector.broadcast %9 : vector<2x1xf32> to vector<2x32xf32>
    %11 = arith.mulf %3, %10 : vector<2x32xf32>
    %c0_5 = arith.constant 0 : index
    %c0_6 = arith.constant 0 : index
    %12 = vector.load %arg3[%c0_5, %c0_6] : memref<2x32xf32, #tpu.memory_space<vmem>>, vector<2x32xf32>
    tpu.vector_store %arg3[%c0_5, %c0_6], %11 {strides = array<i32>} : memref<2x32xf32, #tpu.memory_space<vmem>>, vector<2x32xf32>,
    %c0_7 = arith.constant 0 : index
    %c0_8 = arith.constant 0 : index
    %13 = vector.load %arg2[%c0_7, %c0_8] : memref<10x32xf32, #tpu.memory_space<vmem>>, vector<10x32xf32>
    %cst_9 = arith.constant dense<0.000000e+00> : vector<2x10xf32>
    %14 = tpu.matmul %11, %13, %cst_9 {dimension_numbers = #tpu.dot_dimension_numbers<[1], [1], [0], [0], [0, 0, 1, 0], [], []>} : vector<2x32xf32>, vector<10x32xf32>, vector<2x10xf32> -> vector<2x10xf32>
    %c0_10 = arith.constant 0 : index
    %c0_11 = arith.constant 0 : index
    %15 = vector.load %arg4[%c0_10, %c0_11] : memref<2x10xf32, #tpu.memory_space<vmem>>, vector<2x10xf32>
    tpu.vector_store %arg4[%c0_10, %c0_11], %14 {strides = array<i32>} : memref<2x10xf32, #tpu.memory_space<vmem>>, vector<2x10xf32>,
    return
  }
  func.func @transform_0(%arg0: i32) -> (i32, i32, i32) {
    %c0_i32 = arith.constant 0 : i32
    %c0_i32_0 = arith.constant 0 : i32
    %c0_i32_1 = arith.constant 0 : i32
    return %arg0, %c0_i32, %c0_i32_0 : i32, i32, i32
  }
  func.func @transform_1(%arg0: i32) -> (i32, i32) {
    %c0_i32 = arith.constant 0 : i32
    %c0_i32_0 = arith.constant 0 : i32
    %c0_i32_1 = arith.constant 0 : i32
    return %c0_i32, %c0_i32_0 : i32, i32
  }
  func.func @transform_2(%arg0: i32) -> (i32, i32) {
    %c0_i32 = arith.constant 0 : i32
    %c0_i32_0 = arith.constant 0 : i32
    return %arg0, %c0_i32 : i32, i32
  }
  func.func @transform_3(%arg0: i32) -> (i32, i32) {
    %c0_i32 = arith.constant 0 : i32
    %c0_i32_0 = arith.constant 0 : i32
    return %arg0, %c0_i32 : i32, i32
  }
}

</mosaic_0001>

<llo_original>
// kernel: tpu_custom_call.1
$region0: #{tpu_custom_call.1}
  #allocation0 [shape = 'u32[]', space=smem, size = 0x4, offset = 0x4, fixed_abs, tag = 'smem constant byte address 0x4 - core index']
  #allocation1 [shape = 'u32[144,128]{1,0:T(1,128)}', space=vmem, size = 0x12000, scoped, tag = 'internal scratch']
  %s0 = inlined_call_operand.hbm [shape: f32[2,8,32], index: 0, kind: input, shape index: {}]
  %s1 = inlined_call_operand.hbm [shape: f32[10,32], index: 1, kind: input, shape index: {}]
  %s2 = inlined_call_operand.hbm [shape: f32[2,32], index: 2, kind: output, shape index: {0}]
  %s3 = inlined_call_operand.hbm [shape: f32[2,10], index: 3, kind: output, shape index: {1}]
  %4 = xla_tuple %s2, %s3
  %s5 = sld [smem:[#allocation0]]
  $region34: #{tpu_custom_call.1} parent=0
    _
  %s7 = ssub.s32 1, %s5
  %s8 = scalar_select 0, %s7, %s5
  $region1: #{tpu_custom_call.1} parent=0
    #allocation2 [shape = 'u8[8192]{0}', space=vmem, size = 0x2000, scoped, tag = 'input window, operand 0, single buffered']
    #allocation3 [shape = 's32[1]{0}', space=sflag, size = 0x4, scoped, tag = 'scoped memory for tpu_custom_call.1']
    #allocation4 [shape = 's32[1]{0}', space=sflag, size = 0x4, scoped, tag = 'scoped memory for tpu_custom_call.1']
    #allocation5 [shape = 'u8[8192]{0}', space=vmem, size = 0x2000, scoped, tag = 'input window, operand 1, single buffered']
    #allocation6 [shape = 's32[1]{0}', space=sflag, size = 0x4, scoped, tag = 'scoped memory for tpu_custom_call.1']
    #allocation7 [shape = 'u8[1024]{0}', space=vmem, size = 0x400, scoped, tag = 'output window, operand 0, single buffered']
    #allocation8 [shape = 'u8[1024]{0}', space=vmem, size = 0x400, scoped, tag = 'output window, operand 1, single buffered']
    #allocation9 [shape = 's32[1]{0}', space=sflag, size = 0x4, scoped, tag = 'scoped memory for tpu_custom_call.1']
    %9 = vsyncpa [#allocation3], 0
    %10 = vsyncpa [#allocation6], 0
    %11 = vsyncpa [#allocation4], 0
    %12 = vsyncpa [#allocation9], 0
    // Predicated region
    $region2: #{tpu_custom_call.1} parent=1 // pred_check
      _
    $region3: #{tpu_custom_call.1} parent=1 // pred_check_branch
      %14 = sbr.rel (0) target = $region5
    $region4: #{tpu_custom_call.1} parent=1 // pred_region
      %s16 = ssub.s32 256, 256
      %17 = vsyncadd [#allocation3], %s16
      %s18 = sshll.u32 [#allocation2], 4
      %s19 = int_to_ptr.vmem [resolvable:$true] %s18
      %24 = dma.hbm_to_vmem [thread:$0]  %s0, 256, %s19, [#allocation3], 128, 128, 8
    $region5: #{tpu_custom_call.1} parent=1 // pred_fallthru
      _
    // Predicated region
    $region6: #{tpu_custom_call.1} parent=1 // pred_check
      _
    $region7: #{tpu_custom_call.1} parent=1 // pred_check_branch
      %26 = sbr.rel (0) target = $region9
    $region8: #{tpu_custom_call.1} parent=1 // pred_region
      %s28 = ssub.s32 256, 256
      %29 = vsyncadd [#allocation6], %s28
      %s30 = sshll.u32 [#allocation5], 4
      %s31 = int_to_ptr.vmem [resolvable:$true] %s30
      %36 = dma.hbm_to_vmem [thread:$0]  %s1, 256, %s31, [#allocation6], 128, 128, 8
    $region9: #{tpu_custom_call.1} parent=1 // pred_fallthru
      _
    // Predicated region
    $region10: #{tpu_custom_call.1} parent=1 // pred_check
      _
    $region11: #{tpu_custom_call.1} parent=1 // pred_check_branch
      %38 = sbr.rel (0) target = $region13
    $region12: #{tpu_custom_call.1} parent=1 // pred_region
      %39 = dma.done [#allocation3], 256
    $region13: #{tpu_custom_call.1} parent=1 // pred_fallthru
      _
    // Predicated region
    $region14: #{tpu_custom_call.1} parent=1 // pred_check
      _
    $region15: #{tpu_custom_call.1} parent=1 // pred_check_branch
      %41 = sbr.rel (0) target = $region17
    $region16: #{tpu_custom_call.1} parent=1 // pred_region
      %42 = dma.done [#allocation6], 256
    $region17: #{tpu_custom_call.1} parent=1 // pred_fallthru
      _
    %v43 = vld [vmem:[#allocation2] sm:$0xff]
    %v44 = vld [vmem:[#allocation2 + $0x8] sm:$0xff]
    %vm45 = vcmask 261120
    %v46 = vsel %vm45, %v43, 0.0
    %v47 = vrot.slane %v46, 4
    %v48 = vadd.f32 %v46, %v47
    %v49 = vrot.slane %v48, 2
    %v50 = vadd.f32 %v48, %v49
    %v51 = vrot.slane %v50, 1
    %v52 = vadd.f32 %v50, %v51
    %v53 = vsel %vm45, %v44, 0.0
    %v54 = vrot.slane %v53, 4
    %v55 = vadd.f32 %v53, %v54
    %v56 = vrot.slane %v55, 2
    %v57 = vadd.f32 %v55, %v56
    %v58 = vrot.slane %v57, 1
    %v59 = vadd.f32 %v57, %v58
    %v60 = vrcp.pop 8.0
    %v61 = vmul.f32 %v52, %v60
    %v62 = vmul.f32 %v59, %v60
    %v63 = vmul.f32 %v61, %v61
    %v64 = vmul.f32 %v62, %v62
    %vm67 = vcmask 1041409
    %v68 = vsel %vm67, %v64, %v63
    %vm70 = vcmask 254976
    %v71 = vsel %vm70, %v68, 0.0
    %72 = vadd.xlane.f32.xlu0 %v71
    %v73 = vpop.xlane.xlu0 %72
    %v74 = vmax.f32 %v73, 1e-12
    %v75 = vrsqrt.pop %v74
    %v77 = vrot.slane %v75, 1
    %v80 = vmul.f32 %v61, %v75
    %v81 = vmul.f32 %v62, %v77
    %v84 = vrot.slane %v81, 7
    %v85 = vsel %vm67, %v84, %v80
    %87 = vst.msk [vmem:[#allocation7] sm:$0x3] %vm70, %v85
    %v88 = vld [vmem:[#allocation5] sm:$0xff]
    %v89 = vld [vmem:[#allocation5 + $0x8] sm:$0x3]
    %v90 = vsel %vm45, %v85, 0
    %v93 = vsel %vm45, %v88, 0
    %v96 = vsel %vm45, %v89, 0
    %98 = vmatprep.subr.mxu0 0.0
    %99 = vmatpush1.xpose.msra.mxu0 %v93
    %100 = vmatprep.subr.mxu0 0.0
    %101 = vmatpush1.xpose.msra.mxu0 %v96
    %102 = vmatprep.subr.mxu0 0.0
    %103 = vmatpush1.xpose.msra.mxu0 0.0
    %104 = vmatprep.subr.mxu0 0.0
    %105 = vmatpush1.xpose.msra.mxu0 0.0
    %106 = vmatprep.subr.mxu0 0.0
    %107 = vmatpush1.xpose.msra.mxu0 0.0
    %108 = vmatprep.subr.mxu0 0.0
    %109 = vmatpush1.xpose.msra.mxu0 0.0
    %110 = vmatprep.subr.mxu0 0.0
    %111 = vmatpush1.xpose.msra.mxu0 0.0
    %112 = vmatprep.subr.mxu0 0.0
    %113 = vmatpush1.xpose.msra.mxu0 0.0
    %114 = vmatprep.subr.mxu0 0.0
    %115 = vmatpush1.xpose.msra.mxu0 0.0
    %116 = vmatprep.subr.mxu0 0.0
    %117 = vmatpush1.xpose.msra.mxu0 0.0
    %118 = vmatprep.subr.mxu0 0.0
    %119 = vmatpush1.xpose.msra.mxu0 0.0
    %120 = vmatprep.subr.mxu0 0.0
    %121 = vmatpush1.xpose.msra.mxu0 0.0
    %122 = vmatprep.subr.mxu0 0.0
    %123 = vmatpush1.xpose.msra.mxu0 0.0
    %124 = vmatprep.subr.mxu0 0.0
    %125 = vmatpush1.xpose.msra.mxu0 0.0
    %126 = vmatprep.subr.mxu0 0.0
    %127 = vmatpush1.xpose.msra.mxu0 0.0
    %128 = vmatprep.subr.mxu0 0.0
    %129 = vmatpush1.xpose.msra.mxu0 0.0
    %130 = vmatprep.subr.mxu0 0.0
    %131 = vmatpush1.xpose.msra.mxu0 0.0
    %132 = vmatprep.subr.mxu0 0.0
    %133 = vmatpush1.xpose.msra.mxu0 0.0
    %134 = vmatprep.subr.mxu0 0.0
    %135 = vmatpush1.xpose.msra.mxu0 0.0
    %136 = vmatprep.subr.mxu0 0.0
    %137 = vmatpush1.xpose.msra.mxu0 0.0
    %138 = vmatprep.subr.mxu0 0.0
    %139 = vmatpush1.xpose.msra.mxu0 0.0
    %140 = vmatprep.subr.mxu0 0.0
    %141 = vmatpush1.xpose.msra.mxu0 0.0
    %142 = vmatprep.subr.mxu0 0.0
    %143 = vmatpush1.xpose.msra.mxu0 0.0
    %144 = vmatprep.subr.mxu0 0.0
    %145 = vmatpush1.xpose.msra.mxu0 0.0
    %146 = vmatprep.subr.mxu0 0.0
    %147 = vmatpush1.xpose.msra.mxu0 0.0
    %148 = vmatprep.subr.mxu0 0.0
    %149 = vmatpush1.xpose.msra.mxu0 0.0
    %150 = vmatprep.subr.mxu0 0.0
    %151 = vmatpush1.xpose.msra.mxu0 0.0
    %152 = vmatprep.subr.mxu0 0.0
    %153 = vmatpush1.xpose.msra.mxu0 0.0
    %154 = vmatprep.subr.mxu0 0.0
    %155 = vmatpush1.xpose.msra.mxu0 0.0
    %156 = vmatprep.subr.mxu0 0.0
    %157 = vmatpush1.xpose.msra.mxu0 0.0
    %158 = vmatprep.subr.mxu0 0.0
    %159 = vmatpush1.xpose.msra.mxu0 0.0
    %160 = vmatprep.subr.mxu0 0.0
    %161 = vmatpush1.xpose.msra.mxu0 0.0
    %162 = vmatprep.mubr.f32.mxu0 0.0
    %163 = vmatmul.mubr.f32.gmra.mrb[0].mxu0 %v90
    %v164 = vpop.f32.mrb[0].mxu0
    %v165 = vadd.f32 0.0, %v164
    %v166 = vpop.f32.mrb[0].mxu0
    %167 = vdwg.mxu0
    %vm168 = vcmask 74752
    %169 = vst.msk [vmem:[#allocation8] sm:$0x3] %vm168, %v165
    // Predicated region
    $region18: #{tpu_custom_call.1} parent=1 // pred_check
      _
    $region19: #{tpu_custom_call.1} parent=1 // pred_check_branch
      %171 = sbr.rel (0) target = $region21
    $region20: #{tpu_custom_call.1} parent=1 // pred_region
      %s173 = ssub.s32 32, 32
      %174 = vsyncadd [#allocation4], %s173
      %s176 = sshll.u32 [#allocation7], 4
      %s177 = int_to_ptr.vmem [resolvable:$true] %s176
      %179 = dma.vmem_to_hbm [thread:$0]  %s177, 32, %s2, [#allocation4]
    $region21: #{tpu_custom_call.1} parent=1 // pred_fallthru
      _
    // Predicated region
    $region22: #{tpu_custom_call.1} parent=1 // pred_check
      _
    $region23: #{tpu_custom_call.1} parent=1 // pred_check_branch
      %181 = sbr.rel (0) target = $region25
    $region24: #{tpu_custom_call.1} parent=1 // pred_region
      %s183 = ssub.s32 32, 32
      %184 = vsyncadd [#allocation9], %s183
      %s186 = sshll.u32 [#allocation8], 4
      %s187 = int_to_ptr.vmem [resolvable:$true] %s186
      %189 = dma.vmem_to_hbm [thread:$0]  %s187, 32, %s3, [#allocation9]
    $region25: #{tpu_custom_call.1} parent=1 // pred_fallthru
      _
    // Predicated region
    $region26: #{tpu_custom_call.1} parent=1 // pred_check
      _
    $region27: #{tpu_custom_call.1} parent=1 // pred_check_branch
      %191 = sbr.rel (0) target = $region29
    $region28: #{tpu_custom_call.1} parent=1 // pred_region
      %192 = dma.done [#allocation4], 32
    $region29: #{tpu_custom_call.1} parent=1 // pred_fallthru
      _
    // Predicated region
    $region30: #{tpu_custom_call.1} parent=1 // pred_check
      _
    $region31: #{tpu_custom_call.1} parent=1 // pred_check_branch
      %194 = sbr.rel (0) target = $region33
    $region32: #{tpu_custom_call.1} parent=1 // pred_region
      %195 = dma.done [#allocation9], 32
    $region33: #{tpu_custom_call.1} parent=1 // pred_fallthru
      _
    %196 = vsyncpa [#allocation3], 1
    %197 = vsyncpa [#allocation6], 1
    %198 = vsyncpa [#allocation4], 1
    %199 = vsyncpa [#allocation9], 1

</llo_original>
